<compile_context>
chip_gen: v7x
topology: tpu7x:2x2x1
jax: 0.10.0
libtpu: 0.0.40
codegen_flags: <defaults>
</compile_context>

<pallas_src>
import jax
import jax.numpy as jnp
from jax.experimental import pallas as pl
from jax.experimental.pallas import tpu as pltpu


def rmsnorm_kernel(x_ref, scale_ref, o_ref):
    # x_ref:     (row_tile, D)
    # scale_ref: (1, D) float32   -- fetched once (constant index_map), already f32
    # o_ref:     (row_tile, D)
    x = x_ref[...].astype(jnp.float32)
    scale = scale_ref[...]                                # (1, D), row-broadcast

    d = x.shape[-1]
    inv_d = jnp.float32(1.0 / d)

    # Population variance with centered sum-of-squares (numerically stable).
    mean = jnp.sum(x, axis=-1, keepdims=True) * inv_d      # (row_tile, 1)
    xc = x - mean
    var = jnp.sum(xc * xc, axis=-1, keepdims=True) * inv_d # (row_tile, 1)
    inv = jax.lax.rsqrt(var + jnp.float32(1e-5))           # (row_tile, 1)

    # Numerator uses x (NOT x - mean), exactly as in the PyTorch forward.
    o_ref[...] = ((x * scale) * inv).astype(o_ref.dtype)


def _sublane_multiple(dtype):
    itemsize = jnp.dtype(dtype).itemsize
    if itemsize >= 4:
        return 8        # f32
    if itemsize == 2:
        return 16       # bf16 packs 2 rows / sublane
    return 32           # int8 / fp8


def _choose_row_tile(rows, d, dtype):
    itemsize = jnp.dtype(dtype).itemsize
    sub = _sublane_multiple(dtype)

    # ~4 MiB of x bytes per block (2-8 MiB is the measured HBM-roofline sweet spot),
    # capped at 512 rows — bigger tiles buy nothing and inflate VMEM / f32 scratch.
    target_bytes = 4 * 1024 * 1024
    tile = max(sub, target_bytes // max(d * itemsize, 1))
    tile = min(tile, 512)

    # Prefer >= 8 grid steps (>= 4 per TensorCore on v7x) so both cores pipeline.
    if rows >= 8 * sub:
        tile = min(tile, max(sub, rows // 8))
    else:
        tile = min(tile, rows)

    # Dtype-aware sublane alignment.
    tile = max(sub, (tile // sub) * sub)
    return tile


def rmsnorm(x, scale, *, row_tile=None):
    """x: (..., D) float array, scale: (D,). Returns same shape/dtype as x."""
    orig_shape = x.shape
    D = orig_shape[-1]
    rows = 1
    for s in orig_shape[:-1]:
        rows *= s

    x2d = x.reshape(rows, D)
    # Cast scale to f32 once here; the (1, D) block stays resident across grid steps.
    scale2d = scale.reshape(1, D).astype(jnp.float32)

    if row_tile is None:
        row_tile = _choose_row_tile(rows, D, x.dtype)

    num_tiles = pl.cdiv(rows, row_tile)
    # No row padding / trailing slice: ragged last block is handled by Pallas
    # (OOB writes dropped), avoiding two extra HBM passes over the data.

    itemsize = jnp.dtype(x.dtype).itemsize
    block_bytes = row_tile * D * itemsize
    # in+out double-buffered blocks + headroom for in-kernel f32 temporaries.
    vmem_est = block_bytes * 4 + row_tile * D * 4 * 3 + (1 << 20)
    vmem_limit = int(min(max(vmem_est, 32 << 20), 48 << 20))

    out2d = pl.pallas_call(
        rmsnorm_kernel,
        out_shape=jax.ShapeDtypeStruct((rows, D), x.dtype),
        grid_spec=pltpu.PrefetchScalarGridSpec(
            num_scalar_prefetch=0,
            grid=(num_tiles,),
            in_specs=[
                pl.BlockSpec((row_tile, D), lambda i: (i, 0)),   # x tile
                pl.BlockSpec((1, D), lambda i: (0, 0)),          # scale (resident)
            ],
            out_specs=pl.BlockSpec((row_tile, D), lambda i: (i, 0)),
        ),
        compiler_params=pltpu.CompilerParams(
            dimension_semantics=("parallel",),
            vmem_limit_bytes=vmem_limit,
        ),
    )(x2d, scale2d)

    return out2d.reshape(orig_shape)


if __name__ == "__main__":
    key = jax.random.PRNGKey(0)

    batch, seq, hidden = 2, 8, 32
    x = jax.random.normal(key, (batch, seq, hidden), dtype=jnp.float32)

    # Parameter init matches nn.Parameter(torch.ones(d)).
    scale = jnp.ones((hidden,), dtype=jnp.float32)

    out = rmsnorm(x, scale)
    out = jax.block_until_ready(out)

    # Reference in plain JAX (population variance, correction=0), matching the module.
    var = jnp.var(x, axis=-1, keepdims=True)
    ref = x * scale / jnp.sqrt(var + 1e-5)
    assert out.shape == x.shape and out.dtype == x.dtype
    assert jnp.allclose(out, ref, atol=1e-5, rtol=1e-5)

    print("KERNEL_OK")
</pallas_src>

<mosaic_0001>
module attributes {stable_mosaic.version = 11 : i64} {
  func.func @rmsnorm_kernel(%arg0: i32, %arg1: memref<16x32xf32, #tpu.memory_space<vmem>>, %arg2: memref<1x32xf32, #tpu.memory_space<vmem>>, %arg3: memref<16x32xf32, #tpu.memory_space<vmem>>) attributes {dimension_semantics = [#tpu.dimension_semantics<parallel>], iteration_bounds = array<i64: 1>, scalar_prefetch = 0 : i64, scratch_operands = 0 : i64, tpu.core_type = #tpu.core_type<tc>, window_params = [{transform_indices = @transform_0, window_bounds = array<i64: 16, 32>}, {pipeline_mode = #tpu.pipeline_mode<synchronous>, transform_indices = @transform_1, window_bounds = array<i64: 1, 32>}, {transform_indices = @transform_2, window_bounds = array<i64: 16, 32>}]} {
    %c0 = arith.constant 0 : index
    %c0_0 = arith.constant 0 : index
    %0 = vector.load %arg1[%c0, %c0_0] : memref<16x32xf32, #tpu.memory_space<vmem>>, vector<16x32xf32>
    %c0_1 = arith.constant 0 : index
    %c0_2 = arith.constant 0 : index
    %1 = vector.load %arg2[%c0_1, %c0_2] : memref<1x32xf32, #tpu.memory_space<vmem>>, vector<1x32xf32>
    %cst = arith.constant dense<0.000000e+00> : vector<16xf32>
    %2 = vector.multi_reduction <add>, %0, %cst [1] : vector<16x32xf32> to vector<16xf32>
    %3 = vector.shape_cast %2 : vector<16xf32> to vector<16x1xf32>
    %cst_3 = arith.constant 3.125000e-02 : f32
    %4 = vector.broadcast %cst_3 : f32 to vector<16x1xf32>
    %5 = arith.mulf %3, %4 : vector<16x1xf32>
    %6 = vector.broadcast %5 : vector<16x1xf32> to vector<16x32xf32>
    %7 = arith.subf %0, %6 : vector<16x32xf32>
    %8 = arith.mulf %7, %7 : vector<16x32xf32>
    %cst_4 = arith.constant dense<0.000000e+00> : vector<16xf32>
    %9 = vector.multi_reduction <add>, %8, %cst_4 [1] : vector<16x32xf32> to vector<16xf32>
    %10 = vector.shape_cast %9 : vector<16xf32> to vector<16x1xf32>
    %cst_5 = arith.constant 3.125000e-02 : f32
    %11 = vector.broadcast %cst_5 : f32 to vector<16x1xf32>
    %12 = arith.mulf %10, %11 : vector<16x1xf32>
    %cst_6 = arith.constant 9.99999974E-6 : f32
    %13 = vector.broadcast %cst_6 : f32 to vector<16x1xf32>
    %14 = arith.addf %12, %13 : vector<16x1xf32>
    %15 = math.rsqrt %14 : vector<16x1xf32>
    %16 = vector.broadcast %1 : vector<1x32xf32> to vector<16x32xf32>
    %17 = arith.mulf %0, %16 : vector<16x32xf32>
    %18 = vector.broadcast %15 : vector<16x1xf32> to vector<16x32xf32>
    %19 = arith.mulf %17, %18 : vector<16x32xf32>
    %c0_7 = arith.constant 0 : index
    %c0_8 = arith.constant 0 : index
    %20 = vector.load %arg3[%c0_7, %c0_8] : memref<16x32xf32, #tpu.memory_space<vmem>>, vector<16x32xf32>
    tpu.vector_store %arg3[%c0_7, %c0_8], %19 {strides = array<i32>} : memref<16x32xf32, #tpu.memory_space<vmem>>, vector<16x32xf32>,
    return
  }
  func.func @transform_0(%arg0: i32) -> (i32, i32) {
    %c0_i32 = arith.constant 0 : i32
    %c0_i32_0 = arith.constant 0 : i32
    return %arg0, %c0_i32 : i32, i32
  }
  func.func @transform_1(%arg0: i32) -> (i32, i32) {
    %c0_i32 = arith.constant 0 : i32
    %c0_i32_0 = arith.constant 0 : i32
    %c0_i32_1 = arith.constant 0 : i32
    return %c0_i32, %c0_i32_0 : i32, i32
  }
  func.func @transform_2(%arg0: i32) -> (i32, i32) {
    %c0_i32 = arith.constant 0 : i32
    %c0_i32_0 = arith.constant 0 : i32
    return %arg0, %c0_i32 : i32, i32
  }
}

</mosaic_0001>

<llo_original>
// kernel: tpu_custom_call.1
$region0: #{tpu_custom_call.1}
  #allocation0 [shape = 'u32[]', space=smem, size = 0x4, offset = 0x4, fixed_abs, tag = 'smem constant byte address 0x4 - core index']
  #allocation1 [shape = 'u32[144,128]{1,0:T(1,128)}', space=vmem, size = 0x12000, scoped, tag = 'internal scratch']
  %s0 = inlined_call_operand.hbm [shape: f32[16,32], index: 0, kind: input, shape index: {}]
  %s1 = inlined_call_operand.vmem [shape: f32[1,32], index: 1, kind: input, shape index: {}]
  %s2 = inlined_call_operand.hbm [shape: f32[16,32], index: 2, kind: output, shape index: {}]
  %s3 = sld [smem:[#allocation0]]
  $region22: #{tpu_custom_call.1} parent=0
    _
  %s5 = ssub.s32 1, %s3
  %s6 = scalar_select 0, %s5, %s3
  $region1: #{tpu_custom_call.1} parent=0
    #allocation2 [shape = 'u8[8192]{0}', space=vmem, size = 0x2000, scoped, tag = 'input window, operand 0, single buffered']
    #allocation3 [shape = 's32[1]{0}', space=sflag, size = 0x4, scoped, tag = 'scoped memory for tpu_custom_call.1']
    #allocation4 [shape = 's32[1]{0}', space=sflag, size = 0x4, scoped, tag = 'scoped memory for tpu_custom_call.1']
    #allocation5 [shape = 'u8[8192]{0}', space=vmem, size = 0x2000, scoped, tag = 'output window, operand 0, single buffered']
    %7 = vsyncpa [#allocation3], 0
    %8 = vsyncpa [#allocation4], 0
    // Predicated region
    $region2: #{tpu_custom_call.1} parent=1 // pred_check
      _
    $region3: #{tpu_custom_call.1} parent=1 // pred_check_branch
      %10 = sbr.rel (0) target = $region5
    $region4: #{tpu_custom_call.1} parent=1 // pred_region
      %s12 = ssub.s32 256, 256
      %13 = vsyncadd [#allocation3], %s12
      %s14 = sshll.u32 [#allocation2], 4
      %s15 = int_to_ptr.vmem [resolvable:$true] %s14
      %20 = dma.hbm_to_vmem [thread:$0]  %s0, 256, %s15, [#allocation3], 128, 128, 8
    $region5: #{tpu_custom_call.1} parent=1 // pred_fallthru
      _
    // Predicated region
    $region6: #{tpu_custom_call.1} parent=1 // pred_check
      _
    $region7: #{tpu_custom_call.1} parent=1 // pred_check_branch
      %22 = sbr.rel (0) target = $region9
    $region8: #{tpu_custom_call.1} parent=1 // pred_region
      _
    $region9: #{tpu_custom_call.1} parent=1 // pred_fallthru
      _
    // Predicated region
    $region10: #{tpu_custom_call.1} parent=1 // pred_check
      _
    $region11: #{tpu_custom_call.1} parent=1 // pred_check_branch
      %24 = sbr.rel (0) target = $region13
    $region12: #{tpu_custom_call.1} parent=1 // pred_region
      %25 = dma.done [#allocation3], 256
    $region13: #{tpu_custom_call.1} parent=1 // pred_fallthru
      _
    %v26 = vld [vmem:[#allocation2] sm:$0xff]
    %v27 = vld [vmem:[#allocation2 + $0x8] sm:$0xff]
    %v28 = vld [vmem:[%s1] sm:$0x1]
    %vm29 = vcmask 261120
    %v30 = vsel %vm29, %v26, 0.0
    %31 = vadd.xlane.f32.xlu0 %v30
    %v32 = vpop.xlane.xlu0 %31
    %v33 = vsel %vm29, %v27, 0.0
    %34 = vadd.xlane.f32.xlu0 %v33
    %v35 = vpop.xlane.xlu0 %34
    %v36 = vmul.f32 %v32, 0.03125
    %v37 = vmul.f32 %v35, 0.03125
    %v38 = vsub.f32 %v26, %v36
    %v39 = vsub.f32 %v27, %v37
    %v40 = vmul.f32 %v38, %v38
    %v41 = vmul.f32 %v39, %v39
    %v42 = vsel %vm29, %v40, 0.0
    %43 = vadd.xlane.f32.xlu0 %v42
    %v44 = vpop.xlane.xlu0 %43
    %v45 = vsel %vm29, %v41, 0.0
    %46 = vadd.xlane.f32.xlu0 %v45
    %v47 = vpop.xlane.xlu0 %46
    %v48 = vmul.f32 %v44, 0.03125
    %v49 = vmul.f32 %v47, 0.03125
    %v50 = vadd.f32 %v48, 1e-05
    %v51 = vadd.f32 %v49, 1e-05
    %v52 = vrsqrt.pop %v50
    %v53 = vrsqrt.pop %v51
    %v55 = vlaneseq
    %v56 = vshrl.u32 %v55, 7
    %v57 = vsub.s32 0, %v56
    %v58 = vrot.slane %v28, %v57
    %v60 = vmul.f32 %v26, %v58
    %v61 = vmul.f32 %v27, %v58
    %v62 = vmul.f32 %v60, %v52
    %v63 = vmul.f32 %v61, %v53
    %64 = vst.msk [vmem:[#allocation5] sm:$0xff] %vm29, %v62
    %65 = vst.msk [vmem:[#allocation5 + $0x8] sm:$0xff] %vm29, %v63
    // Predicated region
    $region14: #{tpu_custom_call.1} parent=1 // pred_check
      _
    $region15: #{tpu_custom_call.1} parent=1 // pred_check_branch
      %67 = sbr.rel (0) target = $region17
    $region16: #{tpu_custom_call.1} parent=1 // pred_region
      %s69 = ssub.s32 256, 256
      %70 = vsyncadd [#allocation4], %s69
      %s71 = sshll.u32 [#allocation5], 4
      %s72 = int_to_ptr.vmem [resolvable:$true] %s71
      %77 = dma.vmem_to_hbm [thread:$0]  %s72, 256, %s2, [#allocation4], 128, 128, 8
    $region17: #{tpu_custom_call.1} parent=1 // pred_fallthru
      _
    // Predicated region
    $region18: #{tpu_custom_call.1} parent=1 // pred_check
      _
    $region19: #{tpu_custom_call.1} parent=1 // pred_check_branch
      %79 = sbr.rel (0) target = $region21
    $region20: #{tpu_custom_call.1} parent=1 // pred_region
      %80 = dma.done [#allocation4], 256
    $region21: #{tpu_custom_call.1} parent=1 // pred_fallthru
      _
    %81 = vsyncpa [#allocation3], 1
    %82 = vsyncpa [#allocation4], 1

</llo_original>
